<compile_context>
chip_gen: v7x
topology: tpu7x:2x2x1
jax: 0.10.0
libtpu: 0.0.40
codegen_flags: <defaults>
</compile_context>

<pallas_src>
import functools
import math

import jax
import jax.numpy as jnp
from jax.experimental import pallas as pl
from jax.experimental.pallas import tpu as pltpu


# --------------------------------------------------------------------------- #
# Shared pairwise-distance tile (identical code in both kernels so pd is
# computed bit-identically; the (xx_row + xx_col) grouping keeps pd exactly
# symmetric, which the mutual-knn column test relies on).
# --------------------------------------------------------------------------- #
def _pd_tile(x_rows_nc, x_rows_cn, x_cn):
    f32 = jnp.float32
    inner = jnp.dot(x_rows_nc, x_cn, preferred_element_type=f32)          # (tq, N)
    xx_all = jnp.sum(x_cn * x_cn, axis=0, keepdims=True)                  # (1, N)
    xx_rows = jnp.transpose(
        jnp.sum(x_rows_cn * x_rows_cn, axis=0, keepdims=True))            # (tq, 1)
    return 2.0 * inner - (xx_all + xx_rows)                               # (tq, N)


# --------------------------------------------------------------------------- #
# Pass 1: per-row k-th largest pairwise distance (knn threshold) per batch.
# --------------------------------------------------------------------------- #
def _knn_kth_kernel(knn_k, x_full_ref, x_tile_ref, kth_ref):
    x_cn = x_full_ref[0]                       # (C, N)
    x_rows_cn = x_tile_ref[0]                  # (C, tq)
    x_rows_nc = jnp.transpose(x_rows_cn)       # (tq, C)

    pd = _pd_tile(x_rows_nc, x_rows_cn, x_cn)  # (tq, N)

    # k iterated row-maxes.  TODO(synk): matches torch.topk only for distinct
    # values; exact ties may admit extra neighbours into the mask.
    work = pd
    kth = None
    for i in range(knn_k):
        kth = jnp.max(work, axis=-1, keepdims=True)          # (tq, 1)
        if i + 1 < knn_k:
            work = jnp.where(work >= kth, -jnp.inf, work)

    kth_ref[0] = jnp.transpose(kth)            # (1, tq), lane-dense store


# --------------------------------------------------------------------------- #
# Pass 2: masked multi-head attention + mh_filter + cat_filter, query tiled.
# --------------------------------------------------------------------------- #
def _attn_prop_kernel(head, head_dim,
                      x_full_ref,    # (1, C, N)   f32
                      x_tile_ref,    # (1, C, tq)  f32
                      kth_full_ref,  # (1, 1, N)   f32
                      kth_tile_ref,  # (1, 1, tq)  f32
                      w_row_ref, b_row_ref,   # (C, 3C) bf16, (1, 3C) f32
                      wk_ref, bk_ref,         # (C, C)  bf16, (C, 1)  f32
                      u1_ref, u01_ref,        # (C, H*(C+1)) bf16, (1, H*(C+1)) f32
                      w1b_t_ref,              # (C, 2C) bf16  (BN folded)
                      w2_t_ref, b2_ref,       # (2C, C) bf16, (1, C) f32
                      out_ref):               # (1, C, tq)  f32
    f32 = jnp.float32
    bf16 = jnp.bfloat16
    D = head_dim

    x_cn = x_full_ref[0]                      # (C, N)
    x_rows_cn = x_tile_ref[0]                 # (C, tq)
    C = x_cn.shape[0]
    tq = x_rows_cn.shape[1]

    x_rows_nc = jnp.transpose(x_rows_cn)      # (tq, C) — single row-side relayout

    # ---- knn mutual mask from precomputed per-row thresholds ---------------
    pd = _pd_tile(x_rows_nc, x_rows_cn, x_cn)            # (tq, N) f32
    kth_cols = kth_full_ref[0]                           # (1, N)
    kth_rows = jnp.transpose(kth_tile_ref[0])            # (tq, 1)
    mask = jnp.logical_and(pd >= kth_rows, pd >= kth_cols)   # (tq, N) bool

    # ---- row-side fused projection: [ q / sqrt(D) | x @ w1a_bn ] ------------
    row_proj = jnp.dot(x_rows_nc.astype(bf16), w_row_ref[...],
                       preferred_element_type=f32) + b_row_ref[...]       # (tq, 3C)
    q_all = row_proj[:, :C]                    # (tq, C), score scale pre-folded
    xw1a = row_proj[:, C:]                     # (tq, 2C), BN + b1 + bmh folded

    # ---- column-side: keys (channel-major) + fused value->mh projection ----
    x_cn_b = x_cn.astype(bf16)
    k_cn = jnp.dot(wk_ref[...], x_cn_b, preferred_element_type=f32) + bk_ref[...]  # (C, N)
    x_nc_b = jnp.transpose(x_cn).astype(bf16)                                      # (N, C)
    # tmp1[:, h*(C+1):(h+1)*(C+1)] = [ v_h @ Wmh_h | 1 ]  (denominator column free)
    tmp1 = (jnp.dot(x_nc_b, u1_ref[...], preferred_element_type=f32)
            + u01_ref[...]).astype(bf16)                                           # (N, H*(C+1))

    # ---- multi-head masked attention (softmax denom fused into the AV dot) --
    mh = jnp.zeros((tq, C), f32)
    for h in range(head):
        qh = q_all[:, h * D:(h + 1) * D].astype(bf16)        # (tq, D)
        kh = k_cn[h * D:(h + 1) * D, :].astype(bf16)         # (D, N)
        s = jnp.dot(qh, kh, preferred_element_type=f32)      # (tq, N)
        s = jnp.where(mask, s, -1e9)
        s = s - jnp.max(s, axis=-1, keepdims=True)
        e = jnp.exp(s).astype(bf16)                          # unnormalized probs
        o1 = jnp.dot(e, tmp1[:, h * (C + 1):(h + 1) * (C + 1)],
                     preferred_element_type=f32)             # (tq, C+1)
        denom = o1[:, C:]                                    # (tq, 1) = row-sum of e
        mh = mh + o1[:, :C] * pl.reciprocal(denom, approx=False)

    # ---- cat_filter: Conv(2C,2C) -> BN(folded) -> ReLU -> Conv(2C,C) --------
    z = xw1a + jnp.dot(mh.astype(bf16), w1b_t_ref[...],
                       preferred_element_type=f32)           # (tq, 2C)
    z = jnp.maximum(z, 0.0)
    z2 = jnp.dot(z.astype(bf16), w2_t_ref[...],
                 preferred_element_type=f32) + b2_ref[...]   # (tq, C)

    out_ref[0] = x_rows_cn + jnp.transpose(z2)               # (C, tq), lane-dense


# --------------------------------------------------------------------------- #
# Parameter preparation (offline weight fusion / folding).
# --------------------------------------------------------------------------- #
def init_params(key, channel):
    """PyTorch-style parameters for the module (BN in eval mode)."""
    C = channel
    ks = jax.random.split(key, 12)
    scale = 0.1

    def rnd(i, shape):
        return scale * jax.random.normal(ks[i], shape, jnp.float32)

    return dict(
        wq=rnd(0, (C, C)), bq=rnd(1, (C,)),
        wk=rnd(2, (C, C)), bk=rnd(3, (C,)),
        wv=rnd(4, (C, C)), bv=rnd(5, (C,)),
        wmh=rnd(6, (C, C)), bmh=rnd(7, (C,)),
        w1=rnd(8, (2 * C, 2 * C)), b1=rnd(9, (2 * C,)),
        gamma=jnp.ones((2 * C,), jnp.float32),
        beta=jnp.zeros((2 * C,), jnp.float32),
        rmean=jnp.zeros((2 * C,), jnp.float32),
        rvar=jnp.ones((2 * C,), jnp.float32),
        w2=rnd(10, (C, 2 * C)), b2=rnd(11, (C,)),
    )


def _prepare_kernel_params(p, C, head, D):
    f32, bf16 = jnp.float32, jnp.bfloat16
    eps = 1e-5

    # TODO(synk): SyncBatchNorm folded in eval mode (running stats); train-mode
    # batch statistics would require a cross-batch pass.
    bn_scale = p["gamma"] / jnp.sqrt(p["rvar"] + eps)                 # (2C,)
    bn_shift = p["beta"] - p["rmean"] * bn_scale                      # (2C,)

    inv_sqrt_d = 1.0 / math.sqrt(D)
    w1a_t_bn = p["w1"][:, :C].T * bn_scale[None, :]                   # (C, 2C)
    w1b_t_bn = p["w1"][:, C:].T * bn_scale[None, :]                   # (C, 2C)
    # b1 + BN shift + contribution of the mh_filter bias through w1b.
    b1_eff = p["b1"] * bn_scale + bn_shift + p["bmh"] @ w1b_t_bn      # (2C,)

    # Row-side fused projection: [ wq.T / sqrt(D) | w1a.T * bn_scale ].
    w_row = jnp.concatenate([p["wq"].T * inv_sqrt_d, w1a_t_bn], axis=1)      # (C, 3C)
    b_row = jnp.concatenate([p["bq"] * inv_sqrt_d, b1_eff]).reshape(1, 3 * C)

    # Column-side fused value -> mh_filter projection, per head, each followed
    # by an all-ones column that yields the softmax denominator from the MXU.
    wv_t, wmh_t = p["wv"].T, p["wmh"].T                               # (C, C)
    u_blocks, u0_blocks = [], []
    for h in range(head):
        sl = slice(h * D, (h + 1) * D)
        u_blocks += [wv_t[:, sl] @ wmh_t[sl, :], jnp.zeros((C, 1), f32)]
        u0_blocks += [p["bv"][sl] @ wmh_t[sl, :], jnp.ones((1,), f32)]
    u1 = jnp.concatenate(u_blocks, axis=1)                            # (C, H*(C+1))
    u01 = jnp.concatenate(u0_blocks).reshape(1, head * (C + 1))

    return (
        w_row.astype(bf16), b_row.astype(f32),
        p["wk"].astype(bf16), p["bk"].reshape(C, 1).astype(f32),
        u1.astype(bf16), u01.astype(f32),
        w1b_t_bn.astype(bf16),
        p["w2"].T.astype(bf16), p["b2"].reshape(1, C).astype(f32),
    )


def _pick_query_tile(n):
    for t in (256, 128):
        if n % t == 0 and n >= t:
            return t
    return n


def _vmem_budget_bytes():
    cap = 128 * 1024 * 1024
    try:
        info = pltpu.get_tpu_info()
        cap = int(getattr(info, "vmem_capacity_bytes", cap))
    except Exception:
        pass
    # Leave headroom for pipeline buffers; ~52 MiB on v7x, 100 MiB on v5e/v6e.
    return int(max(32 * 1024 * 1024, min(cap - 12 * 1024 * 1024, 100 * 1024 * 1024)))


# --------------------------------------------------------------------------- #
# Public wrapper.
# --------------------------------------------------------------------------- #
def attention_propagation(desc1, params, *, head, knn_k):
    """desc1: (B, C, N, 1) float32 -> (B, C, N, 1) float32."""
    B, C, N, _ = desc1.shape
    assert C % head == 0
    assert head == 4, "PyTorch module hard-codes .repeat(1, 4, 1, 1)"
    assert 1 <= knn_k <= N, "knn_k must be in [1, N]"
    D = C // head

    x = desc1[..., 0]                                    # (B, C, N)
    kparams = _prepare_kernel_params(params, C, head, D)
    tq = _pick_query_tile(N)
    n_qt = N // tq
    vmem = _vmem_budget_bytes()

    # ---- Pass 1: per-row knn thresholds (once per batch element) -----------
    kth = pl.pallas_call(
        functools.partial(_knn_kth_kernel, knn_k),
        out_shape=jax.ShapeDtypeStruct((B, 1, N), jnp.float32),
        grid=(B, n_qt),
        in_specs=[pl.BlockSpec((1, C, N), lambda b, q: (b, 0, 0)),
                  pl.BlockSpec((1, C, tq), lambda b, q: (b, 0, q))],
        out_specs=pl.BlockSpec((1, 1, tq), lambda b, q: (b, 0, q)),
        compiler_params=pltpu.CompilerParams(
            dimension_semantics=("parallel", "parallel"),
            vmem_limit_bytes=vmem),
    )(x, x)

    # ---- Pass 2: attention + cat_filter, query-row tiled --------------------
    weight_specs = [pl.BlockSpec(p.shape, lambda b, q: (0, 0)) for p in kparams]
    out = pl.pallas_call(
        functools.partial(_attn_prop_kernel, head, D),
        out_shape=jax.ShapeDtypeStruct((B, C, N), jnp.float32),
        grid=(B, n_qt),
        in_specs=[pl.BlockSpec((1, C, N), lambda b, q: (b, 0, 0)),
                  pl.BlockSpec((1, C, tq), lambda b, q: (b, 0, q)),
                  pl.BlockSpec((1, 1, N), lambda b, q: (b, 0, 0)),
                  pl.BlockSpec((1, 1, tq), lambda b, q: (b, 0, q)),
                  *weight_specs],
        out_specs=pl.BlockSpec((1, C, tq), lambda b, q: (b, 0, q)),
        compiler_params=pltpu.CompilerParams(
            dimension_semantics=("parallel", "parallel"),
            vmem_limit_bytes=vmem),
    )(x, x, kth, kth, *kparams)

    return out[..., None]                                # (B, C, N, 1)


if __name__ == "__main__":
    B, C, N = 2, 32, 128      # batch, channel, num points
    head, knn_k = 4, 8        # module was built with head=4 (hard-coded repeat)

    key = jax.random.PRNGKey(0)
    k_data, k_param = jax.random.split(key)
    desc1 = jax.random.normal(k_data, (B, C, N, 1), dtype=jnp.float32)
    params = init_params(k_param, C)

    out = attention_propagation(desc1, params, head=head, knn_k=knn_k)
    out = jax.block_until_ready(out)
    assert out.shape == (B, C, N, 1)
    assert bool(jnp.all(jnp.isfinite(out)))
    print("KERNEL_OK")
</pallas_src>

<mosaic_0001>
module attributes {stable_mosaic.version = 11 : i64} {
  func.func @_knn_kth_kernel(%arg0: i32, %arg1: i32, %arg2: memref<1x32x128xf32, #tpu.memory_space<vmem>>, %arg3: memref<1x32x128xf32, #tpu.memory_space<vmem>>, %arg4: memref<1x1x128xf32, #tpu.memory_space<vmem>>) attributes {dimension_semantics = [#tpu.dimension_semantics<parallel>, #tpu.dimension_semantics<parallel>], iteration_bounds = array<i64: 2, 1>, scalar_prefetch = 0 : i64, scratch_operands = 0 : i64, tpu.core_type = #tpu.core_type<tc>, window_params = [{transform_indices = @transform_0, window_bounds = array<i64: 1, 32, 128>}, {transform_indices = @transform_1, window_bounds = array<i64: 1, 32, 128>}, {transform_indices = @transform_2, window_bounds = array<i64: 1, 1, 128>}]} {
    %c0 = arith.constant 0 : index
    %c0_0 = arith.constant 0 : index
    %c0_1 = arith.constant 0 : index
    %0 = vector.load %arg2[%c0, %c0_0, %c0_1] : memref<1x32x128xf32, #tpu.memory_space<vmem>>, vector<1x32x128xf32>
    %1 = vector.shape_cast %0 : vector<1x32x128xf32> to vector<32x128xf32>
    %c0_2 = arith.constant 0 : index
    %c0_3 = arith.constant 0 : index
    %c0_4 = arith.constant 0 : index
    %2 = vector.load %arg3[%c0_2, %c0_3, %c0_4] : memref<1x32x128xf32, #tpu.memory_space<vmem>>, vector<1x32x128xf32>
    %3 = vector.shape_cast %2 : vector<1x32x128xf32> to vector<32x128xf32>
    %4 = tpu.transpose %3, [1, 0] : vector<32x128xf32> -> vector<128x32xf32>
    %cst = arith.constant dense<0.000000e+00> : vector<128x128xf32>
    %5 = tpu.matmul %4, %1, %cst {dimension_numbers = #tpu.dot_dimension_numbers<[1], [0], [0], [1], [0, 0, 1, 1], [], []>} : vector<128x32xf32>, vector<32x128xf32>, vector<128x128xf32> -> vector<128x128xf32>
    %6 = arith.mulf %1, %1 : vector<32x128xf32>
    %cst_5 = arith.constant dense<0.000000e+00> : vector<128xf32>
    %7 = vector.multi_reduction <add>, %6, %cst_5 [0] : vector<32x128xf32> to vector<128xf32>
    %8 = vector.shape_cast %7 : vector<128xf32> to vector<1x128xf32>
    %9 = arith.mulf %3, %3 : vector<32x128xf32>
    %cst_6 = arith.constant dense<0.000000e+00> : vector<128xf32>
    %10 = vector.multi_reduction <add>, %9, %cst_6 [0] : vector<32x128xf32> to vector<128xf32>
    %11 = vector.shape_cast %10 : vector<128xf32> to vector<1x128xf32>
    %12 = tpu.transpose %11, [1, 0] : vector<1x128xf32> -> vector<128x1xf32>
    %cst_7 = arith.constant 2.000000e+00 : f32
    %13 = vector.broadcast %cst_7 : f32 to vector<128x128xf32>
    %14 = arith.mulf %13, %5 : vector<128x128xf32>
    %15 = vector.broadcast %8 : vector<1x128xf32> to vector<128x128xf32>
    %16 = vector.broadcast %12 : vector<128x1xf32> to vector<128x128xf32>
    %17 = arith.addf %15, %16 : vector<128x128xf32>
    %18 = arith.subf %14, %17 : vector<128x128xf32>
    %cst_8 = arith.constant dense<0xFF800000> : vector<128xf32>
    %19 = vector.multi_reduction <maximumf>, %18, %cst_8 [1] : vector<128x128xf32> to vector<128xf32>
    %20 = vector.shape_cast %19 : vector<128xf32> to vector<128x1xf32>
    %21 = vector.broadcast %20 : vector<128x1xf32> to vector<128x128xf32>
    %22 = arith.cmpf oge, %18, %21 : vector<128x128xf32>
    %cst_9 = arith.constant 0xFF800000 : f32
    %23 = vector.broadcast %cst_9 : f32 to vector<128x128xf32>
    %24 = arith.select %22, %23, %18 : vector<128x128xi1>, vector<128x128xf32>
    %cst_10 = arith.constant dense<0xFF800000> : vector<128xf32>
    %25 = vector.multi_reduction <maximumf>, %24, %cst_10 [1] : vector<128x128xf32> to vector<128xf32>
    %26 = vector.shape_cast %25 : vector<128xf32> to vector<128x1xf32>
    %27 = vector.broadcast %26 : vector<128x1xf32> to vector<128x128xf32>
    %28 = arith.cmpf oge, %24, %27 : vector<128x128xf32>
    %cst_11 = arith.constant 0xFF800000 : f32
    %29 = vector.broadcast %cst_11 : f32 to vector<128x128xf32>
    %30 = arith.select %28, %29, %24 : vector<128x128xi1>, vector<128x128xf32>
    %cst_12 = arith.constant dense<0xFF800000> : vector<128xf32>
    %31 = vector.multi_reduction <maximumf>, %30, %cst_12 [1] : vector<128x128xf32> to vector<128xf32>
    %32 = vector.shape_cast %31 : vector<128xf32> to vector<128x1xf32>
    %33 = vector.broadcast %32 : vector<128x1xf32> to vector<128x128xf32>
    %34 = arith.cmpf oge, %30, %33 : vector<128x128xf32>
    %cst_13 = arith.constant 0xFF800000 : f32
    %35 = vector.broadcast %cst_13 : f32 to vector<128x128xf32>
    %36 = arith.select %34, %35, %30 : vector<128x128xi1>, vector<128x128xf32>
    %cst_14 = arith.constant dense<0xFF800000> : vector<128xf32>
    %37 = vector.multi_reduction <maximumf>, %36, %cst_14 [1] : vector<128x128xf32> to vector<128xf32>
    %38 = vector.shape_cast %37 : vector<128xf32> to vector<128x1xf32>
    %39 = vector.broadcast %38 : vector<128x1xf32> to vector<128x128xf32>
    %40 = arith.cmpf oge, %36, %39 : vector<128x128xf32>
    %cst_15 = arith.constant 0xFF800000 : f32
    %41 = vector.broadcast %cst_15 : f32 to vector<128x128xf32>
    %42 = arith.select %40, %41, %36 : vector<128x128xi1>, vector<128x128xf32>
    %cst_16 = arith.constant dense<0xFF800000> : vector<128xf32>
    %43 = vector.multi_reduction <maximumf>, %42, %cst_16 [1] : vector<128x128xf32> to vector<128xf32>
    %44 = vector.shape_cast %43 : vector<128xf32> to vector<128x1xf32>
    %45 = vector.broadcast %44 : vector<128x1xf32> to vector<128x128xf32>
    %46 = arith.cmpf oge, %42, %45 : vector<128x128xf32>
    %cst_17 = arith.constant 0xFF800000 : f32
    %47 = vector.broadcast %cst_17 : f32 to vector<128x128xf32>
    %48 = arith.select %46, %47, %42 : vector<128x128xi1>, vector<128x128xf32>
    %cst_18 = arith.constant dense<0xFF800000> : vector<128xf32>
    %49 = vector.multi_reduction <maximumf>, %48, %cst_18 [1] : vector<128x128xf32> to vector<128xf32>
    %50 = vector.shape_cast %49 : vector<128xf32> to vector<128x1xf32>
    %51 = vector.broadcast %50 : vector<128x1xf32> to vector<128x128xf32>
    %52 = arith.cmpf oge, %48, %51 : vector<128x128xf32>
    %cst_19 = arith.constant 0xFF800000 : f32
    %53 = vector.broadcast %cst_19 : f32 to vector<128x128xf32>
    %54 = arith.select %52, %53, %48 : vector<128x128xi1>, vector<128x128xf32>
    %cst_20 = arith.constant dense<0xFF800000> : vector<128xf32>
    %55 = vector.multi_reduction <maximumf>, %54, %cst_20 [1] : vector<128x128xf32> to vector<128xf32>
    %56 = vector.shape_cast %55 : vector<128xf32> to vector<128x1xf32>
    %57 = vector.broadcast %56 : vector<128x1xf32> to vector<128x128xf32>
    %58 = arith.cmpf oge, %54, %57 : vector<128x128xf32>
    %cst_21 = arith.constant 0xFF800000 : f32
    %59 = vector.broadcast %cst_21 : f32 to vector<128x128xf32>
    %60 = arith.select %58, %59, %54 : vector<128x128xi1>, vector<128x128xf32>
    %cst_22 = arith.constant dense<0xFF800000> : vector<128xf32>
    %61 = vector.multi_reduction <maximumf>, %60, %cst_22 [1] : vector<128x128xf32> to vector<128xf32>
    %62 = vector.shape_cast %61 : vector<128xf32> to vector<128x1xf32>
    %63 = tpu.transpose %62, [1, 0] : vector<128x1xf32> -> vector<1x128xf32>
    %c0_23 = arith.constant 0 : index
    %c0_24 = arith.constant 0 : index
    %c0_25 = arith.constant 0 : index
    %64 = vector.load %arg4[%c0_23, %c0_24, %c0_25] : memref<1x1x128xf32, #tpu.memory_space<vmem>>, vector<1x1x128xf32>
    %65 = vector.shape_cast %64 : vector<1x1x128xf32> to vector<1x128xf32>
    %66 = vector.shape_cast %63 : vector<1x128xf32> to vector<1x1x128xf32>
    tpu.vector_store %arg4[%c0_23, %c0_24, %c0_25], %66 {strides = array<i32>} : memref<1x1x128xf32, #tpu.memory_space<vmem>>, vector<1x1x128xf32>,
    return
  }
  func.func @transform_0(%arg0: i32, %arg1: i32) -> (i32, i32, i32) {
    %c0_i32 = arith.constant 0 : i32
    %c0_i32_0 = arith.constant 0 : i32
    %c0_i32_1 = arith.constant 0 : i32
    return %arg0, %c0_i32, %c0_i32_0 : i32, i32, i32
  }
  func.func @transform_1(%arg0: i32, %arg1: i32) -> (i32, i32, i32) {
    %c0_i32 = arith.constant 0 : i32
    %c0_i32_0 = arith.constant 0 : i32
    return %arg0, %c0_i32, %arg1 : i32, i32, i32
  }
  func.func @transform_2(%arg0: i32, %arg1: i32) -> (i32, i32, i32) {
    %c0_i32 = arith.constant 0 : i32
    %c0_i32_0 = arith.constant 0 : i32
    return %arg0, %c0_i32, %arg1 : i32, i32, i32
  }
}

</mosaic_0001>

<llo_original>
// kernel: tpu_custom_call.1
$region0: #{tpu_custom_call.1}
  #allocation0 [shape = 'u32[]', space=smem, size = 0x4, offset = 0x4, fixed_abs, tag = 'smem constant byte address 0x4 - core index']
  #allocation1 [shape = 'u32[144,128]{1,0:T(1,128)}', space=vmem, size = 0x12000, scoped, tag = 'internal scratch']
  %s0 = inlined_call_operand.hbm [shape: f32[2,32,128], index: 0, kind: input, shape index: {}]
  %s1 = inlined_call_operand.hbm [shape: f32[2,32,128], index: 1, kind: input, shape index: {}]
  %s2 = inlined_call_operand.hbm [shape: f32[2,1,128], index: 2, kind: output, shape index: {}]
  %s3 = sld [smem:[#allocation0]]
  $region49: #{tpu_custom_call.1} parent=0
    _
  %s5 = ssub.s32 1, %s3
  %s6 = scalar_select 0, %s5, %s3
  $region1: #{tpu_custom_call.1} parent=0
    #allocation2 [shape = 'u8[32768]{0}', space=vmem, size = 0x8000, scoped, tag = 'input window, operand 0']
    #allocation3 [shape = 's32[2]{0}', space=sflag, size = 0x8, scoped, tag = 'scoped memory for tpu_custom_call.1']
    #allocation4 [shape = 's32[2]{0}', space=sflag, size = 0x8, scoped, tag = 'scoped memory for tpu_custom_call.1']
    #allocation5 [shape = 'u8[32768]{0}', space=vmem, size = 0x8000, scoped, tag = 'input window, operand 1']
    #allocation6 [shape = 's32[2]{0}', space=sflag, size = 0x8, scoped, tag = 'scoped memory for tpu_custom_call.1']
    #allocation7 [shape = 'u8[1024]{0}', space=vmem, size = 0x400, scoped, tag = 'output window, operand 0']
    %7 = vsyncpa [#allocation3], 0
    %s8 = scalar_lea.sflag [#allocation3], 1
    %9 = vsyncpa %s8, 0
    %10 = vsyncpa [#allocation6], 0
    %s11 = scalar_lea.sflag [#allocation6], 1
    %12 = vsyncpa %s11, 0
    %13 = vsyncpa [#allocation4], 0
    %s14 = scalar_lea.sflag [#allocation4], 1
    %15 = vsyncpa %s14, 0
    loop: start=0, step=1, limit=4
    $region2: #{tpu_custom_call.1} parent=1 // loop_pre_header
      _
    $region3: #{tpu_custom_call.1} parent=1 // loop_header
      %s17 = sphi 0, %s21
      %p18 = scmp.ge.s32.totalorder %s17, 4
      %s24 = sphi 0, %s36
      %s25 = sphi 0, %s32
      %s26 = sphi 0, %s24
      %s27 = sphi 0, %s25
      %s28 = sphi 0, %s26
      %s29 = sphi 0, %s27
      %s39 = sphi 0, %s41
      %s42 = sphi 0, %s39
      %s43 = sphi 0, %s42
      %s59 = sphi 0, %s43
      %s67 = sphi 0, %s69
      %s70 = sphi 0, %s67
      %s71 = sphi 0, %s70
      %s87 = sphi 0, %s71
      %s95 = sphi 0, %s97
      %s98 = sphi 0, %s95
      %s99 = sphi 0, %s98
      %s115 = sphi 0, %s99
    $region4: #{tpu_custom_call.1} parent=1 // loop_header_branch
      %20 = sbr.rel (%p18) target = $region8
    $region5: #{tpu_custom_call.1} parent=1 // loop_body
      %s22 = ssub.s32 %s17, 1
      %s23 = ssub.s32 %s17, 2
      %s30 = sadd.s32 1, %s25
      %p31 = scmp.ge.s32.totalorder %s30, 1
      %s32 = scalar_select %p31, 0, %s30
      %s33 = sadd.s32 1, %s24
      %s34 = scalar_select %p31, %s33, %s24
      %p35 = scmp.ge.s32.totalorder %s34, 2
      %s36 = scalar_select %p35, 0, %s34
      %s37 = ssub.s32 %s24, %s36
      %p38 = scmp.eq.s32.totalorder %s37, 0
      %s40 = sadd.s32 %s39, 1
      %s41 = scalar_select %p38, %s39, %s40
      %p44 = pneg %p38
      %p45 = scmp.eq.s32.totalorder %s17, 1
      %p46 = por %p44, %p45
      %p47 = scmp.ne.s32.totalorder %s39, %s42
      %p48 = scmp.eq.s32.totalorder %s17, 0
      %p49 = por %p47, %p48
      %p50 = scmp.ne.s32.totalorder %s39, %s42
      %p51 = scmp.eq.s32.totalorder %s22, 1
      %p52 = por %p50, %p51
      %p53 = scmp.ne.s32.totalorder %s42, %s43
      %p54 = scmp.eq.s32.totalorder %s22, 0
      %p55 = por %p53, %p54
      %p56 = scmp.ne.s32.totalorder %s42, %s43
      %p57 = scmp.eq.s32.totalorder %s23, 1
      %p58 = por %p56, %p57
      %p60 = scmp.ne.s32.totalorder %s43, %s59
      %p61 = scmp.eq.s32.totalorder %s23, 0
      %p62 = por %p60, %p61
      %s63 = ssub.s32 %s24, %s36
      %s64 = ssub.s32 %s25, %s32
      %s65 = sor.u32 %s63, %s64
      %p66 = scmp.eq.s32.totalorder %s65, 0
      %s68 = sadd.s32 %s67, 1
      %s69 = scalar_select %p66, %s67, %s68
      %p72 = pneg %p66
      %p73 = scmp.eq.s32.totalorder %s17, 1
      %p74 = por %p72, %p73
      %p75 = scmp.ne.s32.totalorder %s67, %s70
      %p76 = scmp.eq.s32.totalorder %s17, 0
      %p77 = por %p75, %p76
      %p78 = scmp.ne.s32.totalorder %s67, %s70
      %p79 = scmp.eq.s32.totalorder %s22, 1
      %p80 = por %p78, %p79
      %p81 = scmp.ne.s32.totalorder %s70, %s71
      %p82 = scmp.eq.s32.totalorder %s22, 0
      %p83 = por %p81, %p82
      %p84 = scmp.ne.s32.totalorder %s70, %s71
      %p85 = scmp.eq.s32.totalorder %s23, 1
      %p86 = por %p84, %p85
      %p88 = scmp.ne.s32.totalorder %s71, %s87
      %p89 = scmp.eq.s32.totalorder %s23, 0
      %p90 = por %p88, %p89
      %s91 = ssub.s32 %s24, %s36
      %s92 = ssub.s32 %s25, %s32
      %s93 = sor.u32 %s91, %s92
      %p94 = scmp.eq.s32.totalorder %s93, 0
      %s96 = sadd.s32 %s95, 1
      %s97 = scalar_select %p94, %s95, %s96
      %p100 = pneg %p94
      %p101 = scmp.eq.s32.totalorder %s17, 1
      %p102 = por %p100, %p101
      %p103 = scmp.ne.s32.totalorder %s95, %s98
      %p104 = scmp.eq.s32.totalorder %s17, 0
      %p105 = por %p103, %p104
      %p106 = scmp.ne.s32.totalorder %s95, %s98
      %p107 = scmp.eq.s32.totalorder %s22, 1
      %p108 = por %p106, %p107
      %p109 = scmp.ne.s32.totalorder %s98, %s99
      %p110 = scmp.eq.s32.totalorder %s22, 0
      %p111 = por %p109, %p110
      %p112 = scmp.ne.s32.totalorder %s98, %s99
      %p113 = scmp.eq.s32.totalorder %s23, 1
      %p114 = por %p112, %p113
      %p116 = scmp.ne.s32.totalorder %s99, %s115
      %p117 = scmp.eq.s32.totalorder %s23, 0
      %p118 = por %p116, %p117
      %p119 = scmp.le.s32.totalorder 1, %s17
      %p120 = scmp.lt.s32.totalorder %s17, 3
      %p121 = pnand %p119, %p120
      %p122 = pneg %p121
      // Predicated region
      $region9: #{tpu_custom_call.1} parent=5 // pred_check
        _
      $region10: #{tpu_custom_call.1} parent=5 // pred_check_branch
        %124 = sbr.rel (%p121) target = $region12
      $region11: #{tpu_custom_call.1} parent=5 // pred_region
        %s125 = ssub.s32 %s17, 1
      $region12: #{tpu_custom_call.1} parent=5 // pred_fallthru
        _
      %p126 = scmp.lt.s32.totalorder %s17, 2
      // Predicated region
      $region13: #{tpu_custom_call.1} parent=5 // pred_check
        %p127 = pneg %p126
      $region14: #{tpu_custom_call.1} parent=5 // pred_check_branch
        %129 = sbr.rel (%p127) target = $region16
      $region15: #{tpu_custom_call.1} parent=5 // pred_region
        // Predicated region
        $region17: #{tpu_custom_call.1} parent=15 // pred_check
          %p130 = pneg %p49
        $region18: #{tpu_custom_call.1} parent=15 // pred_check_branch
          %132 = sbr.rel (%p130) target = $region20
        $region19: #{tpu_custom_call.1} parent=15 // pred_region
          %s133 = sand.u32 %s39, 1
          %s134 = scalar_lea.sflag [#allocation3], %s133
          %s135 = sand.u32 %s39, 1
          %s136 = smul.addr %s135, 32
          %s137 = scalar_lea.vmem [#allocation2], %s136
          %s139 = ssub.s32 512, 512
          %140 = vsyncadd %s134, %s139
          %s141 = smul.addr %s24, 4
          %s142 = smul.addr %s141, 128
          %s143 = scalar_lea.hbm %s0, %s142
          %s144 = sshll.u32 %s137, 4
          %s145 = int_to_ptr.vmem [resolvable:$true] %s144
          %150 = dma.hbm_to_vmem [thread:$0]  %s143, 512, %s145, %s134, 128, 128, 8
        $region20: #{tpu_custom_call.1} parent=15 // pred_fallthru
          _
        // Predicated region
        $region21: #{tpu_custom_call.1} parent=15 // pred_check
          %p151 = pneg %p77
        $region22: #{tpu_custom_call.1} parent=15 // pred_check_branch
          %153 = sbr.rel (%p151) target = $region24
        $region23: #{tpu_custom_call.1} parent=15 // pred_region
          %s154 = sand.u32 %s67, 1
          %s155 = scalar_lea.sflag [#allocation6], %s154
          %s156 = sand.u32 %s67, 1
          %s157 = smul.addr %s156, 32
          %s158 = scalar_lea.vmem [#allocation5], %s157
          %s160 = ssub.s32 512, 512
          %161 = vsyncadd %s155, %s160
          %s162 = smul.addr %s24, 4
          %s163 = sadd.s32 %s25, %s162
          %s164 = smul.addr %s163, 128
          %s165 = scalar_lea.hbm %s1, %s164
          %s166 = sshll.u32 %s158, 4
          %s167 = int_to_ptr.vmem [resolvable:$true] %s166
          %172 = dma.hbm_to_vmem [thread:$0]  %s165, 512, %s167, %s155, 128, 128, 8
        $region24: #{tpu_custom_call.1} parent=15 // pred_fallthru
          _
      $region16: #{tpu_custom_call.1} parent=5 // pred_fallthru
        _
      %p173 = scmp.le.s32.totalorder 1, %s17
      %p174 = scmp.lt.s32.totalorder %s17, 3
      %p175 = pnand %p173, %p174
      %p176 = pneg %p175
      // Predicated region
      $region25: #{tpu_custom_call.1} parent=5 // pred_check
        _
      $region26: #{tpu_custom_call.1} parent=5 // pred_check_branch
        %178 = sbr.rel (%p175) target = $region28
      $region27: #{tpu_custom_call.1} parent=5 // pred_region
        %s179 = ssub.s32 %s17, 1
        %s180 = sand.u32 %s42, 1
        %s181 = scalar_lea.sflag [#allocation3], %s180
        %s182 = sand.u32 %s42, 1
        %s183 = smul.addr %s182, 32
        %s184 = scalar_lea.vmem [#allocation2], %s183
        // Predicated region
        $region29: #{tpu_custom_call.1} parent=27 // pred_check
          %p185 = pneg %p55
        $region30: #{tpu_custom_call.1} parent=27 // pred_check_branch
          %187 = sbr.rel (%p185) target = $region32
        $region31: #{tpu_custom_call.1} parent=27 // pred_region
          %188 = dma.done %s181, 512
        $region32: #{tpu_custom_call.1} parent=27 // pred_fallthru
          _
        %s189 = sand.u32 %s70, 1
        %s190 = scalar_lea.sflag [#allocation6], %s189
        %s191 = sand.u32 %s70, 1
        %s192 = smul.addr %s191, 32
        %s193 = scalar_lea.vmem [#allocation5], %s192
        // Predicated region
        $region33: #{tpu_custom_call.1} parent=27 // pred_check
          %p194 = pneg %p83
        $region34: #{tpu_custom_call.1} parent=27 // pred_check_branch
          %196 = sbr.rel (%p194) target = $region36
        $region35: #{tpu_custom_call.1} parent=27 // pred_region
          %197 = dma.done %s190, 512
        $region36: #{tpu_custom_call.1} parent=27 // pred_fallthru
          _
        %s198 = sand.u32 %s42, 1
        %s199 = scalar_lea.sflag [#allocation3], %s198
        %s200 = sand.u32 %s42, 1
        %s201 = smul.addr %s200, 32
        %s202 = scalar_lea.vmem [#allocation2], %s201
        %p203 = pneg %p55
        %p204 = pneg %p52
        %s205 = sand.u32 %s70, 1
        %s206 = scalar_lea.sflag [#allocation6], %s205
        %s207 = sand.u32 %s70, 1
        %s208 = smul.addr %s207, 32
        %s209 = scalar_lea.vmem [#allocation5], %s208
        %p210 = pneg %p83
        %p211 = pneg %p80
        %p212 = pneg %p111
        %p213 = pneg %p108
        %s214 = sand.u32 %s98, 1
        %s215 = scalar_lea.sflag [#allocation4], %s214
        %s216 = sand.u32 %s98, 1
        %s217 = scalar_lea.vmem [#allocation7], %s216
        %v218 = vld [vmem:[%s184] sm:$0xff]
        %v219 = vld [vmem:[%s184 + $0x8] sm:$0xff]
        %v220 = vld [vmem:[%s184 + $0x10] sm:$0xff]
        %v221 = vld [vmem:[%s184 + $0x18] sm:$0xff]
        %v222 = vld [vmem:[%s193] sm:$0xff]
        %v223 = vld [vmem:[%s193 + $0x8] sm:$0xff]
        %v224 = vld [vmem:[%s193 + $0x10] sm:$0xff]
        %v225 = vld [vmem:[%s193 + $0x18] sm:$0xff]
        %226 = vxpose.xlu0.b32.start [1/16] %v222, 128
        %227 = vxpose.xlu0.b32.cont [2/16] %v223, 128
        %228 = vxpose.xlu0.b32.cont [3/16] %v224, 128
        %229 = vxpose.xlu0.b32.cont [4/16] %v225, 128
        %230 = vxpose.xlu0.b32.cont [5/16] 0.0, 128
        %231 = vxpose.xlu0.b32.cont [6/16] 0.0, 128
        %232 = vxpose.xlu0.b32.cont [7/16] 0.0, 128
        %233 = vxpose.xlu0.b32.cont [8/16] 0.0, 128
        %234 = vxpose.xlu0.b32.cont [9/16] 0.0, 128
        %235 = vxpose.xlu0.b32.cont [10/16] 0.0, 128
        %236 = vxpose.xlu0.b32.cont [11/16] 0.0, 128
        %237 = vxpose.xlu0.b32.cont [12/16] 0.0, 128
        %238 = vxpose.xlu0.b32.cont [13/16] 0.0, 128
        %239 = vxpose.xlu0.b32.cont [14/16] 0.0, 128
        %240 = vxpose.xlu0.b32.cont [15/16] 0.0, 128
        %241 = vxpose.xlu0.b32.end [16/16] 0.0, 128
        %v242 = vpop.trf.xlu0
        %v243 = vpop.trf.xlu0
        %v244 = vpop.trf.xlu0
        %v245 = vpop.trf.xlu0
        %v246 = vpop.trf.xlu0
        %v247 = vpop.trf.xlu0
        %v248 = vpop.trf.xlu0
        %v249 = vpop.trf.xlu0
        %v250 = vpop.trf.xlu0
        %v251 = vpop.trf.xlu0
        %v252 = vpop.trf.xlu0
        %v253 = vpop.trf.xlu0
        %v254 = vpop.trf.xlu0
        %v255 = vpop.trf.xlu0
        %v256 = vpop.trf.xlu0
        %v257 = vpop.trf.xlu0
        %vm258 = vcmask 261120
        %v260 = vsel %vm258, %v242, 0
        %v263 = vsel %vm258, %v243, 0
        %v266 = vsel %vm258, %v244, 0
        %v269 = vsel %vm258, %v245, 0
        %v272 = vsel %vm258, %v246, 0
        %v275 = vsel %vm258, %v247, 0
        %v278 = vsel %vm258, %v248, 0
        %v281 = vsel %vm258, %v249, 0
        %v284 = vsel %vm258, %v250, 0
        %v287 = vsel %vm258, %v251, 0
        %v290 = vsel %vm258, %v252, 0
        %v293 = vsel %vm258, %v253, 0
        %v296 = vsel %vm258, %v254, 0
        %v299 = vsel %vm258, %v255, 0
        %v302 = vsel %vm258, %v256, 0
        %v305 = vsel %vm258, %v257, 0
        %307 = vmatprep.subr.mxu0 0.0
        %308 = vmatpush1.msra.mxu0 %v218
        %309 = vmatprep.subr.mxu0 0.0
        %310 = vmatpush1.msra.mxu0 %v219
        %311 = vmatprep.subr.mxu0 0.0
        %312 = vmatpush1.msra.mxu0 %v220
        %313 = vmatprep.subr.mxu0 0.0
        %314 = vmatpush1.msra.mxu0 %v221
        %315 = vmatprep.subr.mxu0 0.0
        %316 = vmatpush1.msra.mxu0 0.0
        %317 = vmatprep.subr.mxu0 0.0
        %318 = vmatpush1.msra.mxu0 0.0
        %319 = vmatprep.subr.mxu0 0.0
        %320 = vmatpush1.msra.mxu0 0.0
        %321 = vmatprep.subr.mxu0 0.0
        %322 = vmatpush1.msra.mxu0 0.0
        %323 = vmatprep.subr.mxu0 0.0
        %324 = vmatpush1.msra.mxu0 0.0
        %325 = vmatprep.subr.mxu0 0.0
        %326 = vmatpush1.msra.mxu0 0.0
        %327 = vmatprep.subr.mxu0 0.0
        %328 = vmatpush1.msra.mxu0 0.0
        %329 = vmatprep.subr.mxu0 0.0
        %330 = vmatpush1.msra.mxu0 0.0
        %331 = vmatprep.subr.mxu0 0.0
        %332 = vmatpush1.msra.mxu0 0.0
        %333 = vmatprep.subr.mxu0 0.0
        %334 = vmatpush1.msra.mxu0 0.0
        %335 = vmatprep.subr.mxu0 0.0
        %336 = vmatpush1.msra.mxu0 0.0
        %337 = vmatprep.subr.mxu0 0.0
        %338 = vmatpush1.msra.mxu0 0.0
        %339 = vmatprep.subr.mxu0 0.0
        %340 = vmatpush1.msra.mxu0 0.0
        %341 = vmatprep.subr.mxu0 0.0
        %342 = vmatpush1.msra.mxu0 0.0
        %343 = vmatprep.subr.mxu0 0.0
        %344 = vmatpush1.msra.mxu0 0.0
        %345 = vmatprep.subr.mxu0 0.0
        %346 = vmatpush1.msra.mxu0 0.0
        %347 = vmatprep.subr.mxu0 0.0
        %348 = vmatpush1.msra.mxu0 0.0
        %349 = vmatprep.subr.mxu0 0.0
        %350 = vmatpush1.msra.mxu0 0.0
        %351 = vmatprep.subr.mxu0 0.0
        %352 = vmatpush1.msra.mxu0 0.0
        %353 = vmatprep.subr.mxu0 0.0
        %354 = vmatpush1.msra.mxu0 0.0
        %355 = vmatprep.subr.mxu0 0.0
        %356 = vmatpush1.msra.mxu0 0.0
        %357 = vmatprep.subr.mxu0 0.0
        %358 = vmatpush1.msra.mxu0 0.0
        %359 = vmatprep.subr.mxu0 0.0
        %360 = vmatpush1.msra.mxu0 0.0
        %361 = vmatprep.subr.mxu0 0.0
        %362 = vmatpush1.msra.mxu0 0.0
        %363 = vmatprep.subr.mxu0 0.0
        %364 = vmatpush1.msra.mxu0 0.0
        %365 = vmatprep.subr.mxu0 0.0
        %366 = vmatpush1.msra.mxu0 0.0
        %367 = vmatprep.subr.mxu0 0.0
        %368 = vmatpush1.msra.mxu0 0.0
        %369 = vmatprep.subr.mxu0 0.0
        %370 = vmatpush1.msra.mxu0 0.0
        %371 = vmatprep.mubr.f32.mxu0 0.0
        %372 = vmatmul.mubr.f32.gmra.mrb[0].mxu0 %v260
        %v373 = vpop.f32.mrb[0].mxu0
        %v374 = vadd.f32 0.0, %v373
        %v375 = vpop.f32.mrb[0].mxu0
        %376 = vmatprep.mubr.f32.mxu0 0.0
        %377 = vmatmul.mubr.f32.gmra.mrb[0].mxu0 %v263
        %v378 = vpop.f32.mrb[0].mxu0
        %v379 = vadd.f32 0.0, %v378
        %v380 = vpop.f32.mrb[0].mxu0
        %381 = vmatprep.mubr.f32.mxu0 0.0
        %382 = vmatmul.mubr.f32.gmra.mrb[0].mxu0 %v266
        %v383 = vpop.f32.mrb[0].mxu0
        %v384 = vadd.f32 0.0, %v383
        %v385 = vpop.f32.mrb[0].mxu0
        %386 = vmatprep.mubr.f32.mxu0 0.0
        %387 = vmatmul.mubr.f32.gmra.mrb[0].mxu0 %v269
        %v388 = vpop.f32.mrb[0].mxu0
        %v389 = vadd.f32 0.0, %v388
        %v390 = vpop.f32.mrb[0].mxu0
        %391 = vmatprep.mubr.f32.mxu0 0.0
        %392 = vmatmul.mubr.f32.gmra.mrb[0].mxu0 %v272
        %v393 = vpop.f32.mrb[0].mxu0
        %v394 = vadd.f32 0.0, %v393
        %v395 = vpop.f32.mrb[0].mxu0
        %396 = vmatprep.mubr.f32.mxu0 0.0
        %397 = vmatmul.mubr.f32.gmra.mrb[0].mxu0 %v275
        %v398 = vpop.f32.mrb[0].mxu0
        %v399 = vadd.f32 0.0, %v398
        %v400 = vpop.f32.mrb[0].mxu0
        %401 = vmatprep.mubr.f32.mxu0 0.0
        %402 = vmatmul.mubr.f32.gmra.mrb[0].mxu0 %v278
        %v403 = vpop.f32.mrb[0].mxu0
        %v404 = vadd.f32 0.0, %v403
        %v405 = vpop.f32.mrb[0].mxu0
        %406 = vmatprep.mubr.f32.mxu0 0.0
        %407 = vmatmul.mubr.f32.gmra.mrb[0].mxu0 %v281
        %v408 = vpop.f32.mrb[0].mxu0
        %v409 = vadd.f32 0.0, %v408
        %v410 = vpop.f32.mrb[0].mxu0
        %411 = vmatprep.mubr.f32.mxu0 0.0
        %412 = vmatmul.mubr.f32.gmra.mrb[0].mxu0 %v284
        %v413 = vpop.f32.mrb[0].mxu0
        %v414 = vadd.f32 0.0, %v413
        %v415 = vpop.f32.mrb[0].mxu0
        %416 = vmatprep.mubr.f32.mxu0 0.0
        %417 = vmatmul.mubr.f32.gmra.mrb[0].mxu0 %v287
        %v418 = vpop.f32.mrb[0].mxu0
        %v419 = vadd.f32 0.0, %v418
        %v420 = vpop.f32.mrb[0].mxu0
        %421 = vmatprep.mubr.f32.mxu0 0.0
        %422 = vmatmul.mubr.f32.gmra.mrb[0].mxu0 %v290
        %v423 = vpop.f32.mrb[0].mxu0
        %v424 = vadd.f32 0.0, %v423
        %v425 = vpop.f32.mrb[0].mxu0
        %426 = vmatprep.mubr.f32.mxu0 0.0
        %427 = vmatmul.mubr.f32.gmra.mrb[0].mxu0 %v293
        %v428 = vpop.f32.mrb[0].mxu0
        %v429 = vadd.f32 0.0, %v428
        %v430 = vpop.f32.mrb[0].mxu0
        %431 = vmatprep.mubr.f32.mxu0 0.0
        %432 = vmatmul.mubr.f32.gmra.mrb[0].mxu0 %v296
        %v433 = vpop.f32.mrb[0].mxu0
        %v434 = vadd.f32 0.0, %v433
        %v435 = vpop.f32.mrb[0].mxu0
        %436 = vmatprep.mubr.f32.mxu0 0.0
        %437 = vmatmul.mubr.f32.gmra.mrb[0].mxu0 %v299
        %v438 = vpop.f32.mrb[0].mxu0
        %v439 = vadd.f32 0.0, %v438
        %v440 = vpop.f32.mrb[0].mxu0
        %441 = vmatprep.mubr.f32.mxu0 0.0
        %442 = vmatmul.mubr.f32.gmra.mrb[0].mxu0 %v302
        %v443 = vpop.f32.mrb[0].mxu0
        %v444 = vadd.f32 0.0, %v443
        %v445 = vpop.f32.mrb[0].mxu0
        %446 = vmatprep.mubr.f32.mxu0 0.0
        %447 = vmatmul.mubr.f32.gmra.mrb[0].mxu0 %v305
        %v448 = vpop.f32.mrb[0].mxu0
        %v449 = vadd.f32 0.0, %v448
        %v450 = vpop.f32.mrb[0].mxu0
        %451 = vdwg.mxu0
        %v452 = vmul.f32 %v218, %v218
        %v453 = vmul.f32 %v219, %v219
        %v454 = vmul.f32 %v220, %v220
        %v455 = vmul.f32 %v221, %v221
        %v456 = vadd.f32 %v452, %v453
        %v457 = vadd.f32 %v456, %v454
        %v458 = vadd.f32 %v457, %v455
        %v459 = vrot.slane %v458, 4
        %v460 = vadd.f32 %v458, %v459
        %v461 = vrot.slane %v460, 2
        %v462 = vadd.f32 %v460, %v461
        %v463 = vrot.slane %v462, 1
        %v464 = vadd.f32 %v462, %v463
        %v465 = vmul.f32 %v222, %v222
        %v466 = vmul.f32 %v223, %v223
        %v467 = vmul.f32 %v224, %v224
        %v468 = vmul.f32 %v225, %v225
        %v469 = vadd.f32 %v465, %v466
        %v470 = vadd.f32 %v469, %v467
        %v471 = vadd.f32 %v470, %v468
        %v472 = vrot.slane %v471, 4
        %v473 = vadd.f32 %v471, %v472
        %v474 = vrot.slane %v473, 2
        %v475 = vadd.f32 %v473, %v474
        %v476 = vrot.slane %v475, 1
        %v477 = vadd.f32 %v475, %v476
        %478 = vxpose.xlu0.b32.start [1/16] %v477, 128
        %479 = vxpose.xlu0.b32.cont [2/16] 0.0, 128
        %480 = vxpose.xlu0.b32.cont [3/16] 0.0, 128
        %481 = vxpose.xlu0.b32.cont [4/16] 0.0, 128
        %482 = vxpose.xlu0.b32.cont [5/16] 0.0, 128
        %483 = vxpose.xlu0.b32.cont [6/16] 0.0, 128
        %484 = vxpose.xlu0.b32.cont [7/16] 0.0, 128
        %485 = vxpose.xlu0.b32.cont [8/16] 0.0, 128
        %486 = vxpose.xlu0.b32.cont [9/16] 0.0, 128
        %487 = vxpose.xlu0.b32.cont [10/16] 0.0, 128
        %488 = vxpose.xlu0.b32.cont [11/16] 0.0, 128
        %489 = vxpose.xlu0.b32.cont [12/16] 0.0, 128
        %490 = vxpose.xlu0.b32.cont [13/16] 0.0, 128
        %491 = vxpose.xlu0.b32.cont [14/16] 0.0, 128
        %492 = vxpose.xlu0.b32.cont [15/16] 0.0, 128
        %493 = vxpose.xlu0.b32.end [16/16] 0.0, 128
        %v494 = vpop.trf.xlu0
        %v495 = vpop.trf.xlu0
        %v496 = vpop.trf.xlu0
        %v497 = vpop.trf.xlu0
        %v498 = vpop.trf.xlu0
        %v499 = vpop.trf.xlu0
        %v500 = vpop.trf.xlu0
        %v501 = vpop.trf.xlu0
        %v502 = vpop.trf.xlu0
        %v503 = vpop.trf.xlu0
        %v504 = vpop.trf.xlu0
        %v505 = vpop.trf.xlu0
        %v506 = vpop.trf.xlu0
        %v507 = vpop.trf.xlu0
        %v508 = vpop.trf.xlu0
        %v509 = vpop.trf.xlu0
        %v510 = vmul.f32 %v374, 2.0
        %v511 = vmul.f32 %v379, 2.0
        %v512 = vmul.f32 %v384, 2.0
        %v513 = vmul.f32 %v389, 2.0
        %v514 = vmul.f32 %v394, 2.0
        %v515 = vmul.f32 %v399, 2.0
        %v516 = vmul.f32 %v404, 2.0
        %v517 = vmul.f32 %v409, 2.0
        %v518 = vmul.f32 %v414, 2.0
        %v519 = vmul.f32 %v419, 2.0
        %v520 = vmul.f32 %v424, 2.0
        %v521 = vmul.f32 %v429, 2.0
        %v522 = vmul.f32 %v434, 2.0
        %v523 = vmul.f32 %v439, 2.0
        %v524 = vmul.f32 %v444, 2.0
        %v525 = vmul.f32 %v449, 2.0
        %527 = vset.pattern.permute.xlu0 0
        %528 = vperm.xlu0 %527, %v494
        %v529 = vpop.permute.xlu0 %528
        %532 = vset.pattern.permute.xlu0 0
        %533 = vperm.xlu0 %532, %v495
        %v534 = vpop.permute.xlu0 %533
        %537 = vset.pattern.permute.xlu0 0
        %538 = vperm.xlu0 %537, %v496
        %v539 = vpop.permute.xlu0 %538
        %542 = vset.pattern.permute.xlu0 0
        %543 = vperm.xlu0 %542, %v497
        %v544 = vpop.permute.xlu0 %543
        %547 = vset.pattern.permute.xlu0 0
        %548 = vperm.xlu0 %547, %v498
        %v549 = vpop.permute.xlu0 %548
        %552 = vset.pattern.permute.xlu0 0
        %553 = vperm.xlu0 %552, %v499
        %v554 = vpop.permute.xlu0 %553
        %557 = vset.pattern.permute.xlu0 0
        %558 = vperm.xlu0 %557, %v500
        %v559 = vpop.permute.xlu0 %558
        %562 = vset.pattern.permute.xlu0 0
        %563 = vperm.xlu0 %562, %v501
        %v564 = vpop.permute.xlu0 %563
        %567 = vset.pattern.permute.xlu0 0
        %568 = vperm.xlu0 %567, %v502
        %v569 = vpop.permute.xlu0 %568
        %572 = vset.pattern.permute.xlu0 0
        %573 = vperm.xlu0 %572, %v503
        %v574 = vpop.permute.xlu0 %573
        %577 = vset.pattern.permute.xlu0 0
        %578 = vperm.xlu0 %577, %v504
        %v579 = vpop.permute.xlu0 %578
        %582 = vset.pattern.permute.xlu0 0
        %583 = vperm.xlu0 %582, %v505
        %v584 = vpop.permute.xlu0 %583
        %587 = vset.pattern.permute.xlu0 0
        %588 = vperm.xlu0 %587, %v506
        %v589 = vpop.permute.xlu0 %588
        %592 = vset.pattern.permute.xlu0 0
        %593 = vperm.xlu0 %592, %v507
        %v594 = vpop.permute.xlu0 %593
        %597 = vset.pattern.permute.xlu0 0
        %598 = vperm.xlu0 %597, %v508
        %v599 = vpop.permute.xlu0 %598
        %602 = vset.pattern.permute.xlu0 0
        %603 = vperm.xlu0 %602, %v509
        %v604 = vpop.permute.xlu0 %603
        %v606 = vadd.f32 %v464, %v529
        %v607 = vadd.f32 %v464, %v534
        %v608 = vadd.f32 %v464, %v539
        %v609 = vadd.f32 %v464, %v544
        %v610 = vadd.f32 %v464, %v549
        %v611 = vadd.f32 %v464, %v554
        %v612 = vadd.f32 %v464, %v559
        %v613 = vadd.f32 %v464, %v564
        %v614 = vadd.f32 %v464, %v569
        %v615 = vadd.f32 %v464, %v574
        %v616 = vadd.f32 %v464, %v579
        %v617 = vadd.f32 %v464, %v584
        %v618 = vadd.f32 %v464, %v589
        %v619 = vadd.f32 %v464, %v594
        %v620 = vadd.f32 %v464, %v599
        %v621 = vadd.f32 %v464, %v604
        %v622 = vsub.f32 %v510, %v606
        %v623 = vsub.f32 %v511, %v607
        %v624 = vsub.f32 %v512, %v608
        %v625 = vsub.f32 %v513, %v609
        %v626 = vsub.f32 %v514, %v610
        %v627 = vsub.f32 %v515, %v611
        %v628 = vsub.f32 %v516, %v612
        %v629 = vsub.f32 %v517, %v613
        %v630 = vsub.f32 %v518, %v614
        %v631 = vsub.f32 %v519, %v615
        %v632 = vsub.f32 %v520, %v616
        %v633 = vsub.f32 %v521, %v617
        %v634 = vsub.f32 %v522, %v618
        %v635 = vsub.f32 %v523, %v619
        %v636 = vsub.f32 %v524, %v620
        %v637 = vsub.f32 %v525, %v621
        %638 = vmax.xlane.f32.xlu0 %v622
        %v639 = vpop.xlane.xlu0 %638
        %640 = vmax.xlane.f32.xlu0 %v623
        %v641 = vpop.xlane.xlu0 %640
        %642 = vmax.xlane.f32.xlu0 %v624
        %v643 = vpop.xlane.xlu0 %642
        %644 = vmax.xlane.f32.xlu0 %v625
        %v645 = vpop.xlane.xlu0 %644
        %646 = vmax.xlane.f32.xlu0 %v626
        %v647 = vpop.xlane.xlu0 %646
        %648 = vmax.xlane.f32.xlu0 %v627
        %v649 = vpop.xlane.xlu0 %648
        %650 = vmax.xlane.f32.xlu0 %v628
        %v651 = vpop.xlane.xlu0 %650
        %652 = vmax.xlane.f32.xlu0 %v629
        %v653 = vpop.xlane.xlu0 %652
        %654 = vmax.xlane.f32.xlu0 %v630
        %v655 = vpop.xlane.xlu0 %654
        %656 = vmax.xlane.f32.xlu0 %v631
        %v657 = vpop.xlane.xlu0 %656
        %658 = vmax.xlane.f32.xlu0 %v632
        %v659 = vpop.xlane.xlu0 %658
        %660 = vmax.xlane.f32.xlu0 %v633
        %v661 = vpop.xlane.xlu0 %660
        %662 = vmax.xlane.f32.xlu0 %v634
        %v663 = vpop.xlane.xlu0 %662
        %664 = vmax.xlane.f32.xlu0 %v635
        %v665 = vpop.xlane.xlu0 %664
        %666 = vmax.xlane.f32.xlu0 %v636
        %v667 = vpop.xlane.xlu0 %666
        %668 = vmax.xlane.f32.xlu0 %v637
        %v669 = vpop.xlane.xlu0 %668
        %vm670 = vcmp.ge.f32.partialorder %v622, %v639
        %vm671 = vcmp.ge.f32.partialorder %v623, %v641
        %vm672 = vcmp.ge.f32.partialorder %v624, %v643
        %vm673 = vcmp.ge.f32.partialorder %v625, %v645
        %vm674 = vcmp.ge.f32.partialorder %v626, %v647
        %vm675 = vcmp.ge.f32.partialorder %v627, %v649
        %vm676 = vcmp.ge.f32.partialorder %v628, %v651
        %vm677 = vcmp.ge.f32.partialorder %v629, %v653
        %vm678 = vcmp.ge.f32.partialorder %v630, %v655
        %vm679 = vcmp.ge.f32.partialorder %v631, %v657
        %vm680 = vcmp.ge.f32.partialorder %v632, %v659
        %vm681 = vcmp.ge.f32.partialorder %v633, %v661
        %vm682 = vcmp.ge.f32.partialorder %v634, %v663
        %vm683 = vcmp.ge.f32.partialorder %v635, %v665
        %vm684 = vcmp.ge.f32.partialorder %v636, %v667
        %vm685 = vcmp.ge.f32.partialorder %v637, %v669
        %v686 = vsel %vm670, -inf, %v622
        %v687 = vsel %vm671, -inf, %v623
        %v688 = vsel %vm672, -inf, %v624
        %v689 = vsel %vm673, -inf, %v625
        %v690 = vsel %vm674, -inf, %v626
        %v691 = vsel %vm675, -inf, %v627
        %v692 = vsel %vm676, -inf, %v628
        %v693 = vsel %vm677, -inf, %v629
        %v694 = vsel %vm678, -inf, %v630
        %v695 = vsel %vm679, -inf, %v631
        %v696 = vsel %vm680, -inf, %v632
        %v697 = vsel %vm681, -inf, %v633
        %v698 = vsel %vm682, -inf, %v634
        %v699 = vsel %vm683, -inf, %v635
        %v700 = vsel %vm684, -inf, %v636
        %v701 = vsel %vm685, -inf, %v637
        %702 = vmax.xlane.f32.xlu0 %v686
        %v703 = vpop.xlane.xlu0 %702
        %704 = vmax.xlane.f32.xlu0 %v687
        %v705 = vpop.xlane.xlu0 %704
        %706 = vmax.xlane.f32.xlu0 %v688
        %v707 = vpop.xlane.xlu0 %706
        %708 = vmax.xlane.f32.xlu0 %v689
        %v709 = vpop.xlane.xlu0 %708
        %710 = vmax.xlane.f32.xlu0 %v690
        %v711 = vpop.xlane.xlu0 %710
        %712 = vmax.xlane.f32.xlu0 %v691
        %v713 = vpop.xlane.xlu0 %712
        %714 = vmax.xlane.f32.xlu0 %v692
        %v715 = vpop.xlane.xlu0 %714
        %716 = vmax.xlane.f32.xlu0 %v693
        %v717 = vpop.xlane.xlu0 %716
        %718 = vmax.xlane.f32.xlu0 %v694
        %v719 = vpop.xlane.xlu0 %718
        %720 = vmax.xlane.f32.xlu0 %v695
        %v721 = vpop.xlane.xlu0 %720
        %722 = vmax.xlane.f32.xlu0 %v696
        %v723 = vpop.xlane.xlu0 %722
        %724 = vmax.xlane.f32.xlu0 %v697
        %v725 = vpop.xlane.xlu0 %724
        %726 = vmax.xlane.f32.xlu0 %v698
        %v727 = vpop.xlane.xlu0 %726
        %728 = vmax.xlane.f32.xlu0 %v699
        %v729 = vpop.xlane.xlu0 %728
        %730 = vmax.xlane.f32.xlu0 %v700
        %v731 = vpop.xlane.xlu0 %730
        %732 = vmax.xlane.f32.xlu0 %v701
        %v733 = vpop.xlane.xlu0 %732
        %vm734 = vcmp.ge.f32.partialorder %v686, %v703
        %vm735 = vcmp.ge.f32.partialorder %v687, %v705
        %vm736 = vcmp.ge.f32.partialorder %v688, %v707
        %vm737 = vcmp.ge.f32.partialorder %v689, %v709
        %vm738 = vcmp.ge.f32.partialorder %v690, %v711
        %vm739 = vcmp.ge.f32.partialorder %v691, %v713
        %vm740 = vcmp.ge.f32.partialorder %v692, %v715
        %vm741 = vcmp.ge.f32.partialorder %v693, %v717
        %vm742 = vcmp.ge.f32.partialorder %v694, %v719
        %vm743 = vcmp.ge.f32.partialorder %v695, %v721
        %vm744 = vcmp.ge.f32.partialorder %v696, %v723
        %vm745 = vcmp.ge.f32.partialorder %v697, %v725
        %vm746 = vcmp.ge.f32.partialorder %v698, %v727
        %vm747 = vcmp.ge.f32.partialorder %v699, %v729
        %vm748 = vcmp.ge.f32.partialorder %v700, %v731
        %vm749 = vcmp.ge.f32.partialorder %v701, %v733
        %v750 = vsel %vm734, -inf, %v686
        %v751 = vsel %vm735, -inf, %v687
        %v752 = vsel %vm736, -inf, %v688
        %v753 = vsel %vm737, -inf, %v689
        %v754 = vsel %vm738, -inf, %v690
        %v755 = vsel %vm739, -inf, %v691
        %v756 = vsel %vm740, -inf, %v692
        %v757 = vsel %vm741, -inf, %v693
        %v758 = vsel %vm742, -inf, %v694
        %v759 = vsel %vm743, -inf, %v695
        %v760 = vsel %vm744, -inf, %v696
        %v761 = vsel %vm745, -inf, %v697
        %v762 = vsel %vm746, -inf, %v698
        %v763 = vsel %vm747, -inf, %v699
        %v764 = vsel %vm748, -inf, %v700
        %v765 = vsel %vm749, -inf, %v701
        %766 = vmax.xlane.f32.xlu0 %v750
        %v767 = vpop.xlane.xlu0 %766
        %768 = vmax.xlane.f32.xlu0 %v751
        %v769 = vpop.xlane.xlu0 %768
        %770 = vmax.xlane.f32.xlu0 %v752
        %v771 = vpop.xlane.xlu0 %770
        %772 = vmax.xlane.f32.xlu0 %v753
        %v773 = vpop.xlane.xlu0 %772
        %774 = vmax.xlane.f32.xlu0 %v754
        %v775 = vpop.xlane.xlu0 %774
        %776 = vmax.xlane.f32.xlu0 %v755
        %v777 = vpop.xlane.xlu0 %776
        %778 = vmax.xlane.f32.xlu0 %v756
        %v779 = vpop.xlane.xlu0 %778
        %780 = vmax.xlane.f32.xlu0 %v757
        %v781 = vpop.xlane.xlu0 %780
        %782 = vmax.xlane.f32.xlu0 %v758
        %v783 = vpop.xlane.xlu0 %782
        %784 = vmax.xlane.f32.xlu0 %v759
        %v785 = vpop.xlane.xlu0 %784
        %786 = vmax.xlane.f32.xlu0 %v760
        %v787 = vpop.xlane.xlu0 %786
        %788 = vmax.xlane.f32.xlu0 %v761
        %v789 = vpop.xlane.xlu0 %788
        %790 = vmax.xlane.f32.xlu0 %v762
        %v791 = vpop.xlane.xlu0 %790
        %792 = vmax.xlane.f32.xlu0 %v763
        %v793 = vpop.xlane.xlu0 %792
        %794 = vmax.xlane.f32.xlu0 %v764
        %v795 = vpop.xlane.xlu0 %794
        %796 = vmax.xlane.f32.xlu0 %v765
        %v797 = vpop.xlane.xlu0 %796
        %vm798 = vcmp.ge.f32.partialorder %v750, %v767
        %vm799 = vcmp.ge.f32.partialorder %v751, %v769
        %vm800 = vcmp.ge.f32.partialorder %v752, %v771
        %vm801 = vcmp.ge.f32.partialorder %v753, %v773
        %vm802 = vcmp.ge.f32.partialorder %v754, %v775
        %vm803 = vcmp.ge.f32.partialorder %v755, %v777
        %vm804 = vcmp.ge.f32.partialorder %v756, %v779
        %vm805 = vcmp.ge.f32.partialorder %v757, %v781
        %vm806 = vcmp.ge.f32.partialorder %v758, %v783
        %vm807 = vcmp.ge.f32.partialorder %v759, %v785
        %vm808 = vcmp.ge.f32.partialorder %v760, %v787
        %vm809 = vcmp.ge.f32.partialorder %v761, %v789
        %vm810 = vcmp.ge.f32.partialorder %v762, %v791
        %vm811 = vcmp.ge.f32.partialorder %v763, %v793
        %vm812 = vcmp.ge.f32.partialorder %v764, %v795
        %vm813 = vcmp.ge.f32.partialorder %v765, %v797
        %v814 = vsel %vm798, -inf, %v750
        %v815 = vsel %vm799, -inf, %v751
        %v816 = vsel %vm800, -inf, %v752
        %v817 = vsel %vm801, -inf, %v753
        %v818 = vsel %vm802, -inf, %v754
        %v819 = vsel %vm803, -inf, %v755
        %v820 = vsel %vm804, -inf, %v756
        %v821 = vsel %vm805, -inf, %v757
        %v822 = vsel %vm806, -inf, %v758
        %v823 = vsel %vm807, -inf, %v759
        %v824 = vsel %vm808, -inf, %v760
        %v825 = vsel %vm809, -inf, %v761
        %v826 = vsel %vm810, -inf, %v762
        %v827 = vsel %vm811, -inf, %v763
        %v828 = vsel %vm812, -inf, %v764
        %v829 = vsel %vm813, -inf, %v765
        %830 = vmax.xlane.f32.xlu0 %v814
        %v831 = vpop.xlane.xlu0 %830
        %832 = vmax.xlane.f32.xlu0 %v815
        %v833 = vpop.xlane.xlu0 %832
        %834 = vmax.xlane.f32.xlu0 %v816
        %v835 = vpop.xlane.xlu0 %834
        %836 = vmax.xlane.f32.xlu0 %v817
        %v837 = vpop.xlane.xlu0 %836
        %838 = vmax.xlane.f32.xlu0 %v818
        %v839 = vpop.xlane.xlu0 %838
        %840 = vmax.xlane.f32.xlu0 %v819
        %v841 = vpop.xlane.xlu0 %840
        %842 = vmax.xlane.f32.xlu0 %v820
        %v843 = vpop.xlane.xlu0 %842
        %844 = vmax.xlane.f32.xlu0 %v821
        %v845 = vpop.xlane.xlu0 %844
        %846 = vmax.xlane.f32.xlu0 %v822
        %v847 = vpop.xlane.xlu0 %846
        %848 = vmax.xlane.f32.xlu0 %v823
        %v849 = vpop.xlane.xlu0 %848
        %850 = vmax.xlane.f32.xlu0 %v824
        %v851 = vpop.xlane.xlu0 %850
        %852 = vmax.xlane.f32.xlu0 %v825
        %v853 = vpop.xlane.xlu0 %852
        %854 = vmax.xlane.f32.xlu0 %v826
        %v855 = vpop.xlane.xlu0 %854
        %856 = vmax.xlane.f32.xlu0 %v827
        %v857 = vpop.xlane.xlu0 %856
        %858 = vmax.xlane.f32.xlu0 %v828
        %v859 = vpop.xlane.xlu0 %858
        %860 = vmax.xlane.f32.xlu0 %v829
        %v861 = vpop.xlane.xlu0 %860
        %vm862 = vcmp.ge.f32.partialorder %v814, %v831
        %vm863 = vcmp.ge.f32.partialorder %v815, %v833
        %vm864 = vcmp.ge.f32.partialorder %v816, %v835
        %vm865 = vcmp.ge.f32.partialorder %v817, %v837
        %vm866 = vcmp.ge.f32.partialorder %v818, %v839
        %vm867 = vcmp.ge.f32.partialorder %v819, %v841
        %vm868 = vcmp.ge.f32.partialorder %v820, %v843
        %vm869 = vcmp.ge.f32.partialorder %v821, %v845
        %vm870 = vcmp.ge.f32.partialorder %v822, %v847
        %vm871 = vcmp.ge.f32.partialorder %v823, %v849
        %vm872 = vcmp.ge.f32.partialorder %v824, %v851
        %vm873 = vcmp.ge.f32.partialorder %v825, %v853
        %vm874 = vcmp.ge.f32.partialorder %v826, %v855
        %vm875 = vcmp.ge.f32.partialorder %v827, %v857
        %vm876 = vcmp.ge.f32.partialorder %v828, %v859
        %vm877 = vcmp.ge.f32.partialorder %v829, %v861
        %v878 = vsel %vm862, -inf, %v814
        %v879 = vsel %vm863, -inf, %v815
        %v880 = vsel %vm864, -inf, %v816
        %v881 = vsel %vm865, -inf, %v817
        %v882 = vsel %vm866, -inf, %v818
        %v883 = vsel %vm867, -inf, %v819
        %v884 = vsel %vm868, -inf, %v820
        %v885 = vsel %vm869, -inf, %v821
        %v886 = vsel %vm870, -inf, %v822
        %v887 = vsel %vm871, -inf, %v823
        %v888 = vsel %vm872, -inf, %v824
        %v889 = vsel %vm873, -inf, %v825
        %v890 = vsel %vm874, -inf, %v826
        %v891 = vsel %vm875, -inf, %v827
        %v892 = vsel %vm876, -inf, %v828
        %v893 = vsel %vm877, -inf, %v829
        %894 = vmax.xlane.f32.xlu0 %v878
        %v895 = vpop.xlane.xlu0 %894
        %896 = vmax.xlane.f32.xlu0 %v879
        %v897 = vpop.xlane.xlu0 %896
        %898 = vmax.xlane.f32.xlu0 %v880
        %v899 = vpop.xlane.xlu0 %898
        %900 = vmax.xlane.f32.xlu0 %v881
        %v901 = vpop.xlane.xlu0 %900
        %902 = vmax.xlane.f32.xlu0 %v882
        %v903 = vpop.xlane.xlu0 %902
        %904 = vmax.xlane.f32.xlu0 %v883
        %v905 = vpop.xlane.xlu0 %904
        %906 = vmax.xlane.f32.xlu0 %v884
        %v907 = vpop.xlane.xlu0 %906
        %908 = vmax.xlane.f32.xlu0 %v885
        %v909 = vpop.xlane.xlu0 %908
        %910 = vmax.xlane.f32.xlu0 %v886
        %v911 = vpop.xlane.xlu0 %910
        %912 = vmax.xlane.f32.xlu0 %v887
        %v913 = vpop.xlane.xlu0 %912
        %914 = vmax.xlane.f32.xlu0 %v888
        %v915 = vpop.xlane.xlu0 %914
        %916 = vmax.xlane.f32.xlu0 %v889
        %v917 = vpop.xlane.xlu0 %916
        %918 = vmax.xlane.f32.xlu0 %v890
        %v919 = vpop.xlane.xlu0 %918
        %920 = vmax.xlane.f32.xlu0 %v891
        %v921 = vpop.xlane.xlu0 %920
        %922 = vmax.xlane.f32.xlu0 %v892
        %v923 = vpop.xlane.xlu0 %922
        %924 = vmax.xlane.f32.xlu0 %v893
        %v925 = vpop.xlane.xlu0 %924
        %vm926 = vcmp.ge.f32.partialorder %v878, %v895
        %vm927 = vcmp.ge.f32.partialorder %v879, %v897
        %vm928 = vcmp.ge.f32.partialorder %v880, %v899
        %vm929 = vcmp.ge.f32.partialorder %v881, %v901
        %vm930 = vcmp.ge.f32.partialorder %v882, %v903
        %vm931 = vcmp.ge.f32.partialorder %v883, %v905
        %vm932 = vcmp.ge.f32.partialorder %v884, %v907
        %vm933 = vcmp.ge.f32.partialorder %v885, %v909
        %vm934 = vcmp.ge.f32.partialorder %v886, %v911
        %vm935 = vcmp.ge.f32.partialorder %v887, %v913
        %vm936 = vcmp.ge.f32.partialorder %v888, %v915
        %vm937 = vcmp.ge.f32.partialorder %v889, %v917
        %vm938 = vcmp.ge.f32.partialorder %v890, %v919
        %vm939 = vcmp.ge.f32.partialorder %v891, %v921
        %vm940 = vcmp.ge.f32.partialorder %v892, %v923
        %vm941 = vcmp.ge.f32.partialorder %v893, %v925
        %v942 = vsel %vm926, -inf, %v878
        %v943 = vsel %vm927, -inf, %v879
        %v944 = vsel %vm928, -inf, %v880
        %v945 = vsel %vm929, -inf, %v881
        %v946 = vsel %vm930, -inf, %v882
        %v947 = vsel %vm931, -inf, %v883
        %v948 = vsel %vm932, -inf, %v884
        %v949 = vsel %vm933, -inf, %v885
        %v950 = vsel %vm934, -inf, %v886
        %v951 = vsel %vm935, -inf, %v887
        %v952 = vsel %vm936, -inf, %v888
        %v953 = vsel %vm937, -inf, %v889
        %v954 = vsel %vm938, -inf, %v890
        %v955 = vsel %vm939, -inf, %v891
        %v956 = vsel %vm940, -inf, %v892
        %v957 = vsel %vm941, -inf, %v893
        %958 = vmax.xlane.f32.xlu0 %v942
        %v959 = vpop.xlane.xlu0 %958
        %960 = vmax.xlane.f32.xlu0 %v943
        %v961 = vpop.xlane.xlu0 %960
        %962 = vmax.xlane.f32.xlu0 %v944
        %v963 = vpop.xlane.xlu0 %962
        %964 = vmax.xlane.f32.xlu0 %v945
        %v965 = vpop.xlane.xlu0 %964
        %966 = vmax.xlane.f32.xlu0 %v946
        %v967 = vpop.xlane.xlu0 %966
        %968 = vmax.xlane.f32.xlu0 %v947
        %v969 = vpop.xlane.xlu0 %968
        %970 = vmax.xlane.f32.xlu0 %v948
        %v971 = vpop.xlane.xlu0 %970
        %972 = vmax.xlane.f32.xlu0 %v949
        %v973 = vpop.xlane.xlu0 %972
        %974 = vmax.xlane.f32.xlu0 %v950
        %v975 = vpop.xlane.xlu0 %974
        %976 = vmax.xlane.f32.xlu0 %v951
        %v977 = vpop.xlane.xlu0 %976
        %978 = vmax.xlane.f32.xlu0 %v952
        %v979 = vpop.xlane.xlu0 %978
        %980 = vmax.xlane.f32.xlu0 %v953
        %v981 = vpop.xlane.xlu0 %980
        %982 = vmax.xlane.f32.xlu0 %v954
        %v983 = vpop.xlane.xlu0 %982
        %984 = vmax.xlane.f32.xlu0 %v955
        %v985 = vpop.xlane.xlu0 %984
        %986 = vmax.xlane.f32.xlu0 %v956
        %v987 = vpop.xlane.xlu0 %986
        %988 = vmax.xlane.f32.xlu0 %v957
        %v989 = vpop.xlane.xlu0 %988
        %vm990 = vcmp.ge.f32.partialorder %v942, %v959
        %vm991 = vcmp.ge.f32.partialorder %v943, %v961
        %vm992 = vcmp.ge.f32.partialorder %v944, %v963
        %vm993 = vcmp.ge.f32.partialorder %v945, %v965
        %vm994 = vcmp.ge.f32.partialorder %v946, %v967
        %vm995 = vcmp.ge.f32.partialorder %v947, %v969
        %vm996 = vcmp.ge.f32.partialorder %v948, %v971
        %vm997 = vcmp.ge.f32.partialorder %v949, %v973
        %vm998 = vcmp.ge.f32.partialorder %v950, %v975
        %vm999 = vcmp.ge.f32.partialorder %v951, %v977
        %vm1000 = vcmp.ge.f32.partialorder %v952, %v979
        %vm1001 = vcmp.ge.f32.partialorder %v953, %v981
        %vm1002 = vcmp.ge.f32.partialorder %v954, %v983
        %vm1003 = vcmp.ge.f32.partialorder %v955, %v985
        %vm1004 = vcmp.ge.f32.partialorder %v956, %v987
        %vm1005 = vcmp.ge.f32.partialorder %v957, %v989
        %v1006 = vsel %vm990, -inf, %v942
        %v1007 = vsel %vm991, -inf, %v943
        %v1008 = vsel %vm992, -inf, %v944
        %v1009 = vsel %vm993, -inf, %v945
        %v1010 = vsel %vm994, -inf, %v946
        %v1011 = vsel %vm995, -inf, %v947
        %v1012 = vsel %vm996, -inf, %v948
        %v1013 = vsel %vm997, -inf, %v949
        %v1014 = vsel %vm998, -inf, %v950
        %v1015 = vsel %vm999, -inf, %v951
        %v1016 = vsel %vm1000, -inf, %v952
        %v1017 = vsel %vm1001, -inf, %v953
        %v1018 = vsel %vm1002, -inf, %v954
        %v1019 = vsel %vm1003, -inf, %v955
        %v1020 = vsel %vm1004, -inf, %v956
        %v1021 = vsel %vm1005, -inf, %v957
        %1022 = vmax.xlane.f32.xlu0 %v1006
        %v1023 = vpop.xlane.xlu0 %1022
        %1024 = vmax.xlane.f32.xlu0 %v1007
        %v1025 = vpop.xlane.xlu0 %1024
        %1026 = vmax.xlane.f32.xlu0 %v1008
        %v1027 = vpop.xlane.xlu0 %1026
        %1028 = vmax.xlane.f32.xlu0 %v1009
        %v1029 = vpop.xlane.xlu0 %1028
        %1030 = vmax.xlane.f32.xlu0 %v1010
        %v1031 = vpop.xlane.xlu0 %1030
        %1032 = vmax.xlane.f32.xlu0 %v1011
        %v1033 = vpop.xlane.xlu0 %1032
        %1034 = vmax.xlane.f32.xlu0 %v1012
        %v1035 = vpop.xlane.xlu0 %1034
        %1036 = vmax.xlane.f32.xlu0 %v1013
        %v1037 = vpop.xlane.xlu0 %1036
        %1038 = vmax.xlane.f32.xlu0 %v1014
        %v1039 = vpop.xlane.xlu0 %1038
        %1040 = vmax.xlane.f32.xlu0 %v1015
        %v1041 = vpop.xlane.xlu0 %1040
        %1042 = vmax.xlane.f32.xlu0 %v1016
        %v1043 = vpop.xlane.xlu0 %1042
        %1044 = vmax.xlane.f32.xlu0 %v1017
        %v1045 = vpop.xlane.xlu0 %1044
        %1046 = vmax.xlane.f32.xlu0 %v1018
        %v1047 = vpop.xlane.xlu0 %1046
        %1048 = vmax.xlane.f32.xlu0 %v1019
        %v1049 = vpop.xlane.xlu0 %1048
        %1050 = vmax.xlane.f32.xlu0 %v1020
        %v1051 = vpop.xlane.xlu0 %1050
        %1052 = vmax.xlane.f32.xlu0 %v1021
        %v1053 = vpop.xlane.xlu0 %1052
        %vm1054 = vcmp.ge.f32.partialorder %v1006, %v1023
        %vm1055 = vcmp.ge.f32.partialorder %v1007, %v1025
        %vm1056 = vcmp.ge.f32.partialorder %v1008, %v1027
        %vm1057 = vcmp.ge.f32.partialorder %v1009, %v1029
        %vm1058 = vcmp.ge.f32.partialorder %v1010, %v1031
        %vm1059 = vcmp.ge.f32.partialorder %v1011, %v1033
        %vm1060 = vcmp.ge.f32.partialorder %v1012, %v1035
        %vm1061 = vcmp.ge.f32.partialorder %v1013, %v1037
        %vm1062 = vcmp.ge.f32.partialorder %v1014, %v1039
        %vm1063 = vcmp.ge.f32.partialorder %v1015, %v1041
        %vm1064 = vcmp.ge.f32.partialorder %v1016, %v1043
        %vm1065 = vcmp.ge.f32.partialorder %v1017, %v1045
        %vm1066 = vcmp.ge.f32.partialorder %v1018, %v1047
        %vm1067 = vcmp.ge.f32.partialorder %v1019, %v1049
        %vm1068 = vcmp.ge.f32.partialorder %v1020, %v1051
        %vm1069 = vcmp.ge.f32.partialorder %v1021, %v1053
        %v1070 = vsel %vm1054, -inf, %v1006
        %v1071 = vsel %vm1055, -inf, %v1007
        %v1072 = vsel %vm1056, -inf, %v1008
        %v1073 = vsel %vm1057, -inf, %v1009
        %v1074 = vsel %vm1058, -inf, %v1010
        %v1075 = vsel %vm1059, -inf, %v1011
        %v1076 = vsel %vm1060, -inf, %v1012
        %v1077 = vsel %vm1061, -inf, %v1013
        %v1078 = vsel %vm1062, -inf, %v1014
        %v1079 = vsel %vm1063, -inf, %v1015
        %v1080 = vsel %vm1064, -inf, %v1016
        %v1081 = vsel %vm1065, -inf, %v1017
        %v1082 = vsel %vm1066, -inf, %v1018
        %v1083 = vsel %vm1067, -inf, %v1019
        %v1084 = vsel %vm1068, -inf, %v1020
        %v1085 = vsel %vm1069, -inf, %v1021
        %1086 = vmax.xlane.f32.xlu0 %v1070
        %v1087 = vpop.xlane.xlu0 %1086
        %1088 = vmax.xlane.f32.xlu0 %v1071
        %v1089 = vpop.xlane.xlu0 %1088
        %1090 = vmax.xlane.f32.xlu0 %v1072
        %v1091 = vpop.xlane.xlu0 %1090
        %1092 = vmax.xlane.f32.xlu0 %v1073
        %v1093 = vpop.xlane.xlu0 %1092
        %1094 = vmax.xlane.f32.xlu0 %v1074
        %v1095 = vpop.xlane.xlu0 %1094
        %1096 = vmax.xlane.f32.xlu0 %v1075
        %v1097 = vpop.xlane.xlu0 %1096
        %1098 = vmax.xlane.f32.xlu0 %v1076
        %v1099 = vpop.xlane.xlu0 %1098
        %1100 = vmax.xlane.f32.xlu0 %v1077
        %v1101 = vpop.xlane.xlu0 %1100
        %1102 = vmax.xlane.f32.xlu0 %v1078
        %v1103 = vpop.xlane.xlu0 %1102
        %1104 = vmax.xlane.f32.xlu0 %v1079
        %v1105 = vpop.xlane.xlu0 %1104
        %1106 = vmax.xlane.f32.xlu0 %v1080
        %v1107 = vpop.xlane.xlu0 %1106
        %1108 = vmax.xlane.f32.xlu0 %v1081
        %v1109 = vpop.xlane.xlu0 %1108
        %1110 = vmax.xlane.f32.xlu0 %v1082
        %v1111 = vpop.xlane.xlu0 %1110
        %1112 = vmax.xlane.f32.xlu0 %v1083
        %v1113 = vpop.xlane.xlu0 %1112
        %1114 = vmax.xlane.f32.xlu0 %v1084
        %v1115 = vpop.xlane.xlu0 %1114
        %1116 = vmax.xlane.f32.xlu0 %v1085
        %v1117 = vpop.xlane.xlu0 %1116
        %1118 = vxpose.xlu0.b32.start [1/16] %v1087, 128
        %1119 = vxpose.xlu0.b32.cont [2/16] %v1089, 128
        %1120 = vxpose.xlu0.b32.cont [3/16] %v1091, 128
        %1121 = vxpose.xlu0.b32.cont [4/16] %v1093, 128
        %1122 = vxpose.xlu0.b32.cont [5/16] %v1095, 128
        %1123 = vxpose.xlu0.b32.cont [6/16] %v1097, 128
        %1124 = vxpose.xlu0.b32.cont [7/16] %v1099, 128
        %1125 = vxpose.xlu0.b32.cont [8/16] %v1101, 128
        %1126 = vxpose.xlu0.b32.cont [9/16] %v1103, 128
        %1127 = vxpose.xlu0.b32.cont [10/16] %v1105, 128
        %1128 = vxpose.xlu0.b32.cont [11/16] %v1107, 128
        %1129 = vxpose.xlu0.b32.cont [12/16] %v1109, 128
        %1130 = vxpose.xlu0.b32.cont [13/16] %v1111, 128
        %1131 = vxpose.xlu0.b32.cont [14/16] %v1113, 128
        %1132 = vxpose.xlu0.b32.cont [15/16] %v1115, 128
        %1133 = vxpose.xlu0.b32.end [16/16] %v1117, 128
        %v1134 = vpop.trf.xlu0
        %v1135 = vpop.trf.xlu0
        %v1136 = vpop.trf.xlu0
        %v1137 = vpop.trf.xlu0
        %v1138 = vpop.trf.xlu0
        %v1139 = vpop.trf.xlu0
        %v1140 = vpop.trf.xlu0
        %v1141 = vpop.trf.xlu0
        %v1142 = vpop.trf.xlu0
        %v1143 = vpop.trf.xlu0
        %v1144 = vpop.trf.xlu0
        %v1145 = vpop.trf.xlu0
        %v1146 = vpop.trf.xlu0
        %v1147 = vpop.trf.xlu0
        %v1148 = vpop.trf.xlu0
        %v1149 = vpop.trf.xlu0
        %1150 = vst [vmem:[%s217] sm:$0x1] %v1134
        %s1151 = sand.u32 %s98, 1
        %s1152 = scalar_lea.sflag [#allocation4], %s1151
        %s1153 = sand.u32 %s98, 1
        %s1154 = scalar_lea.vmem [#allocation7], %s1153
        // Predicated region
        $region37: #{tpu_custom_call.1} parent=27 // pred_check
          %p1155 = pneg %p108
        $region38: #{tpu_custom_call.1} parent=27 // pred_check_branch
          %1157 = sbr.rel (%p1155) target = $region40
        $region39: #{tpu_custom_call.1} parent=27 // pred_region
          %s1159 = ssub.s32 16, 16
          %1160 = vsyncadd %s1152, %s1159
          %s1161 = sadd.s32 %s27, %s26
          %s1162 = smul.addr %s1161, 16
          %s1163 = scalar_lea.hbm %s2, %s1162
          %s1165 = sshll.u32 %s1154, 4
          %s1166 = int_to_ptr.vmem [resolvable:$true] %s1165
          %1168 = dma.vmem_to_hbm [thread:$0]  %s1166, 16, %s1163, %s1152
        $region40: #{tpu_custom_call.1} parent=27 // pred_fallthru
          _
      $region28: #{tpu_custom_call.1} parent=5 // pred_fallthru
        _
      %p1169 = scmp.le.s32.totalorder 2, %s17
      // Predicated region
      $region41: #{tpu_custom_call.1} parent=5 // pred_check
        %p1170 = pneg %p1169
      $region42: #{tpu_custom_call.1} parent=5 // pred_check_branch
        %1172 = sbr.rel (%p1170) target = $region44
      $region43: #{tpu_custom_call.1} parent=5 // pred_region
        %s1173 = ssub.s32 %s17, 2
        // Predicated region
        $region45: #{tpu_custom_call.1} parent=43 // pred_check
          %p1174 = pneg %p114
        $region46: #{tpu_custom_call.1} parent=43 // pred_check_branch
          %1176 = sbr.rel (%p1174) target = $region48
        $region47: #{tpu_custom_call.1} parent=43 // pred_region
          %s1177 = sand.u32 %s99, 1
          %s1178 = scalar_lea.sflag [#allocation4], %s1177
          %s1179 = sand.u32 %s99, 1
          %s1180 = scalar_lea.vmem [#allocation7], %s1179
          %1181 = dma.done %s1178, 16
        $region48: #{tpu_custom_call.1} parent=43 // pred_fallthru
          _
      $region44: #{tpu_custom_call.1} parent=5 // pred_fallthru
        _
    $region6: #{tpu_custom_call.1} parent=1 // loop_footer
      %s21 = sadd.s32 1, %s17
    $region7: #{tpu_custom_call.1} parent=1 // loop_footer_branch
      %16 = sbr.rel target = $region3
    $region8: #{tpu_custom_call.1} parent=1 // loop_exit
      _
    %1182 = vsyncpa [#allocation3], 1
    %s1183 = scalar_lea.sflag [#allocation3], 1
    %1184 = vsyncpa %s1183, 1
    %1185 = vsyncpa [#allocation6], 1
    %s1186 = scalar_lea.sflag [#allocation6], 1
    %1187 = vsyncpa %s1186, 1
    %1188 = vsyncpa [#allocation4], 1
    %s1189 = scalar_lea.sflag [#allocation4], 1
    %1190 = vsyncpa %s1189, 1

</llo_original>
